<compile_context>
chip_gen: v7x
topology: tpu7x:2x2x1
jax: 0.10.0
libtpu: 0.0.40
codegen_flags: <defaults>
</compile_context>

<pallas_src>
import jax
import jax.numpy as jnp
from jax.experimental import pallas as pl
from jax.experimental.pallas import tpu as pltpu


def _make_clip_kernel(h_max: float, w_max: float):
    """Kernel over a lane-dense (TILE_R, LANE) slab of box coordinates."""

    def kernel(x_ref, o_ref):
        x = x_ref[...]
        xf = x.astype(jnp.float32)  # clamp in f32; exact for f32 inputs,
                                    # avoids bf16 bound-rounding drift.
        # Coordinate id per element: 0=x1, 1=y1, 2=x2, 3=y2.  Every block
        # covers the full LANE extent and LANE % 4 == 0, so block-local
        # lane index & 3 equals the global flat index % 4.
        c = jax.lax.broadcasted_iota(jnp.int32, x.shape, 1) & 3
        hi = jnp.where(c == 2, jnp.float32(w_max), jnp.float32(h_max))
        out = jnp.where(
            c < 2,
            jnp.maximum(xf, 0.0),   # x1, y1: clamp at 0
            jnp.minimum(xf, hi),    # x2: <= W-1, y2: <= H-1
        )
        o_ref[...] = out.astype(x.dtype)

    return kernel


def _pick_lane(total: int):
    """Widest lane count (multiple of 128) dividing `total` -> copy-free
    reshape.  Otherwise LANE=128 so the pad is at most 127 elements."""
    for cand in (4096, 2048, 1024, 512, 256, 128):
        if total % cand == 0:
            return cand, False
    return 128, True


def _pick_tile_rows(rows: int, lane: int, itemsize: int) -> int:
    """~2 MiB tiles (byte-aware), TILE_R a multiple of 8 (or == rows),
    preferring exact divisors of rows (no masked tail) and >= 2 grid steps
    (v7x megacore) when rows permit."""
    target = max(8, (2 * 1024 * 1024) // (lane * itemsize))
    if rows <= 8:
        return rows
    cap = min(target, max(8, rows // 2))
    best = None
    for t in range(8, cap + 1, 8):
        if rows % t == 0:
            best = t
    if best is not None:
        return best
    # No clean multiple-of-8 divisor: last tile is partial (masked store).
    return max(8, (cap // 8) * 8)


def clip_boxes(boxes, img):
    """boxes: [B, N, 4] float, img: [B, C, H, W].
    Returns clipped boxes [B, N, 4] (functional; `boxes` is not mutated)."""
    B, N, four = boxes.shape
    assert four == 4, "boxes must be [B, N, 4]"
    _, _, height, width = img.shape
    dt = boxes.dtype
    itemsize = jnp.dtype(dt).itemsize

    total = B * N * 4
    lane, needs_pad = _pick_lane(total)
    rows = pl.cdiv(total, lane)

    flat = boxes.reshape(total)
    if needs_pad:
        # TODO(synk): replace pad+slice with in-kernel ragged-tail handling to
        # avoid the extra HBM round trip when B*N*4 is not a multiple of 128.
        flat = jnp.pad(flat, (0, rows * lane - total))
    slab = flat.reshape(rows, lane)

    tile_r = _pick_tile_rows(rows, lane, itemsize)
    grid = (pl.cdiv(rows, tile_r),)

    kernel = _make_clip_kernel(float(height - 1), float(width - 1))

    out = pl.pallas_call(
        kernel,
        out_shape=jax.ShapeDtypeStruct((rows, lane), dt),
        grid=grid,
        in_specs=[pl.BlockSpec((tile_r, lane), lambda r: (r, 0))],
        out_specs=pl.BlockSpec((tile_r, lane), lambda r: (r, 0)),
        compiler_params=pltpu.CompilerParams(
            dimension_semantics=("parallel",)),
        cost_estimate=pl.CostEstimate(
            flops=2 * total,
            transcendentals=0,
            bytes_accessed=2 * total * itemsize),
    )(slab)

    out = out.reshape(-1)
    if needs_pad:
        out = out[:total]
    return out.reshape(B, N, 4)


def _reference(boxes, img):
    _, _, height, width = img.shape
    x1 = jnp.maximum(boxes[:, :, 0], 0.0)
    y1 = jnp.maximum(boxes[:, :, 1], 0.0)
    x2 = jnp.minimum(boxes[:, :, 2], float(width - 1))
    y2 = jnp.minimum(boxes[:, :, 3], float(height - 1))
    return jnp.stack([x1, y1, x2, y2], axis=-1)


if __name__ == "__main__":
    key = jax.random.PRNGKey(0)
    k1, k2, k3, k4 = jax.random.split(key, 4)

    # 1) Small case (padded fallback path, single tile).
    B, N = 2, 8
    C, H, W = 4, 16, 16
    boxes = jax.random.uniform(k1, (B, N, 4), dtype=jnp.float32,
                               minval=-10.0, maxval=30.0)
    img = jax.random.normal(k2, (B, C, H, W), dtype=jnp.float32)
    ref = _reference(boxes, img)
    out = jax.block_until_ready(clip_boxes(boxes, img))
    assert out.shape == boxes.shape
    assert jnp.array_equal(out, ref), "mismatch vs reference (small / padded case)"

    # 2) Copy-free lane-dense path (wide LANE, different H/W).
    B2, N2, H2, W2 = 2, 512, 24, 40
    boxes2 = jax.random.uniform(k3, (B2, N2, 4), dtype=jnp.float32,
                                minval=-20.0, maxval=60.0)
    img2 = jnp.zeros((B2, 3, H2, W2), dtype=jnp.float32)
    ref2 = _reference(boxes2, img2)
    out2 = jax.block_until_ready(clip_boxes(boxes2, img2))
    assert jnp.array_equal(out2, ref2), "mismatch vs reference (lane-dense case)"

    # 3) Multi-grid-step path with a partial last tile (LANE=128, rows=125).
    B3, N3, H3, W3 = 4, 1000, 96, 160
    boxes3 = jax.random.uniform(k4, (B3, N3, 4), dtype=jnp.float32,
                                minval=-50.0, maxval=300.0)
    img3 = jnp.zeros((B3, 3, H3, W3), dtype=jnp.float32)
    ref3 = _reference(boxes3, img3)
    out3 = jax.block_until_ready(clip_boxes(boxes3, img3))
    assert jnp.array_equal(out3, ref3), "mismatch vs reference (multi-tile case)"

    print("KERNEL_OK")
</pallas_src>

<mosaic_0001>
module attributes {stable_mosaic.version = 11 : i64} {
  func.func @kernel(%arg0: i32, %arg1: memref<1x128xf32, #tpu.memory_space<vmem>>, %arg2: memref<1x128xf32, #tpu.memory_space<vmem>>) attributes {dimension_semantics = [#tpu.dimension_semantics<parallel>], iteration_bounds = array<i64: 1>, scalar_prefetch = 0 : i64, scratch_operands = 0 : i64, tpu.core_type = #tpu.core_type<tc>, window_params = [{transform_indices = @transform_0, window_bounds = array<i64: 1, 128>}, {transform_indices = @transform_1, window_bounds = array<i64: 1, 128>}]} {
    %c0 = arith.constant 0 : index
    %c0_0 = arith.constant 0 : index
    %0 = vector.load %arg1[%c0, %c0_0] : memref<1x128xf32, #tpu.memory_space<vmem>>, vector<1x128xf32>
    %1 = tpu.iota {dimensions = array<i32: 1>} : vector<1x128xi32>
    %c3_i32 = arith.constant 3 : i32
    %2 = vector.broadcast %c3_i32 : i32 to vector<1x128xi32>
    %3 = arith.andi %1, %2 : vector<1x128xi32>
    %c2_i32 = arith.constant 2 : i32
    %4 = vector.broadcast %c2_i32 : i32 to vector<1x128xi32>
    %5 = arith.cmpi eq, %3, %4 : vector<1x128xi32>
    %cst = arith.constant 1.500000e+01 : f32
    %cst_1 = arith.constant 1.500000e+01 : f32
    %6 = vector.broadcast %cst : f32 to vector<1x128xf32>
    %7 = vector.broadcast %cst_1 : f32 to vector<1x128xf32>
    %8 = arith.select %5, %6, %7 : vector<1x128xi1>, vector<1x128xf32>
    %c2_i32_2 = arith.constant 2 : i32
    %9 = vector.broadcast %c2_i32_2 : i32 to vector<1x128xi32>
    %10 = arith.cmpi slt, %3, %9 : vector<1x128xi32>
    %cst_3 = arith.constant 0.000000e+00 : f32
    %11 = vector.broadcast %cst_3 : f32 to vector<1x128xf32>
    %12 = arith.maximumf %0, %11 : vector<1x128xf32>
    %13 = arith.minimumf %0, %8 : vector<1x128xf32>
    %14 = arith.select %10, %12, %13 : vector<1x128xi1>, vector<1x128xf32>
    %c0_4 = arith.constant 0 : index
    %c0_5 = arith.constant 0 : index
    %15 = vector.load %arg2[%c0_4, %c0_5] : memref<1x128xf32, #tpu.memory_space<vmem>>, vector<1x128xf32>
    tpu.vector_store %arg2[%c0_4, %c0_5], %14 {strides = array<i32>} : memref<1x128xf32, #tpu.memory_space<vmem>>, vector<1x128xf32>,
    return
  }
  func.func @transform_0(%arg0: i32) -> (i32, i32) {
    %c0_i32 = arith.constant 0 : i32
    %c0_i32_0 = arith.constant 0 : i32
    return %arg0, %c0_i32 : i32, i32
  }
  func.func @transform_1(%arg0: i32) -> (i32, i32) {
    %c0_i32 = arith.constant 0 : i32
    %c0_i32_0 = arith.constant 0 : i32
    return %arg0, %c0_i32 : i32, i32
  }
}

</mosaic_0001>

<llo_original>
// kernel: tpu_custom_call.1
$region0: #{tpu_custom_call.1}
  #allocation0 [shape = 'u32[]', space=smem, size = 0x4, offset = 0x4, fixed_abs, tag = 'smem constant byte address 0x4 - core index']
  #allocation1 [shape = 'u32[144,128]{1,0:T(1,128)}', space=vmem, size = 0x12000, scoped, tag = 'internal scratch']
  %s0 = inlined_call_operand.hbm [shape: f32[1,128], index: 0, kind: input, shape index: {}]
  %s1 = inlined_call_operand.hbm [shape: f32[1,128], index: 1, kind: output, shape index: {}]
  %s2 = sld [smem:[#allocation0]]
  $region18: #{tpu_custom_call.1} parent=0
    _
  %s4 = ssub.s32 1, %s2
  %s5 = scalar_select 0, %s4, %s2
  $region1: #{tpu_custom_call.1} parent=0
    #allocation2 [shape = 'u8[512]{0}', space=vmem, size = 0x400, scoped, tag = 'input window, operand 0, single buffered']
    #allocation3 [shape = 's32[1]{0}', space=sflag, size = 0x4, scoped, tag = 'scoped memory for tpu_custom_call.1']
    #allocation4 [shape = 's32[1]{0}', space=sflag, size = 0x4, scoped, tag = 'scoped memory for tpu_custom_call.1']
    #allocation5 [shape = 'u8[512]{0}', space=vmem, size = 0x400, scoped, tag = 'output window, operand 0, single buffered']
    %6 = vsyncpa [#allocation3], 0
    %7 = vsyncpa [#allocation4], 0
    // Predicated region
    $region2: #{tpu_custom_call.1} parent=1 // pred_check
      _
    $region3: #{tpu_custom_call.1} parent=1 // pred_check_branch
      %9 = sbr.rel (0) target = $region5
    $region4: #{tpu_custom_call.1} parent=1 // pred_region
      %s11 = ssub.s32 16, 16
      %12 = vsyncadd [#allocation3], %s11
      %s14 = sshll.u32 [#allocation2], 4
      %s15 = int_to_ptr.vmem [resolvable:$true] %s14
      %17 = dma.hbm_to_vmem [thread:$0]  %s0, 16, %s15, [#allocation3]
    $region5: #{tpu_custom_call.1} parent=1 // pred_fallthru
      _
    // Predicated region
    $region6: #{tpu_custom_call.1} parent=1 // pred_check
      _
    $region7: #{tpu_custom_call.1} parent=1 // pred_check_branch
      %19 = sbr.rel (0) target = $region9
    $region8: #{tpu_custom_call.1} parent=1 // pred_region
      %20 = dma.done [#allocation3], 16
    $region9: #{tpu_custom_call.1} parent=1 // pred_fallthru
      _
    %v21 = vld [vmem:[#allocation2] sm:$0x1]
    %v22 = vlaneseq
    %v23 = vand.u32 %v22, 127
    %v24 = vand.u32 %v23, 3
    %vm25 = vcmp.lt.s32.totalorder %v24, 2
    %v26 = vmax.f32 %v21, 0.0
    %v27 = vmin.f32 %v21, 15.0
    %v28 = vsel %vm25, %v26, %v27
    %29 = vst [vmem:[#allocation5] sm:$0x1] %v28
    // Predicated region
    $region10: #{tpu_custom_call.1} parent=1 // pred_check
      _
    $region11: #{tpu_custom_call.1} parent=1 // pred_check_branch
      %31 = sbr.rel (0) target = $region13
    $region12: #{tpu_custom_call.1} parent=1 // pred_region
      %s33 = ssub.s32 16, 16
      %34 = vsyncadd [#allocation4], %s33
      %s36 = sshll.u32 [#allocation5], 4
      %s37 = int_to_ptr.vmem [resolvable:$true] %s36
      %39 = dma.vmem_to_hbm [thread:$0]  %s37, 16, %s1, [#allocation4]
    $region13: #{tpu_custom_call.1} parent=1 // pred_fallthru
      _
    // Predicated region
    $region14: #{tpu_custom_call.1} parent=1 // pred_check
      _
    $region15: #{tpu_custom_call.1} parent=1 // pred_check_branch
      %41 = sbr.rel (0) target = $region17
    $region16: #{tpu_custom_call.1} parent=1 // pred_region
      %42 = dma.done [#allocation4], 16
    $region17: #{tpu_custom_call.1} parent=1 // pred_fallthru
      _
    %43 = vsyncpa [#allocation3], 1
    %44 = vsyncpa [#allocation4], 1

</llo_original>
